<compile_context>
chip_gen: v7x
topology: tpu7x:2x2x1
jax: 0.10.0
libtpu: 0.0.40
codegen_flags: <defaults>
</compile_context>

<pallas_src>
import math

import jax
import jax.numpy as jnp
from jax.experimental import pallas as pl
from jax.experimental.pallas import tpu as pltpu


def gcn_kernel(x_ref, adj_ref, w_ref, mask_ref, b_ref, out_ref):
    # x_ref    : (B, N, H*Fin)   lane-dense packed node features
    # adj_ref  : (B, N, H*N)     lane-dense packed adjacency
    # w_ref    : (H*Fin, H*Fout) block-diagonal weight (heads independent)
    # mask_ref : (H*N, H*Fout)   0/1 head-expansion / block-diagonal mask
    # b_ref    : (1, H*Fout)     bias tiled per head
    # out_ref  : (B, N, H*Fout)  lane-dense packed output
    B, N, HFin = x_ref.shape
    HFout = out_ref.shape[-1]
    H = mask_ref.shape[0] // N

    w = w_ref[...]
    mask = mask_ref[...]
    bias = b_ref[...]

    # Support for all batches & all heads in ONE MXU matmul:
    # (B*N, H*Fin) @ (H*Fin, H*Fout).  Merging the leading dims is layout-free
    # (N is a multiple of 8).
    x_all = x_ref[...].reshape(B * N, HFin)
    support_all = jnp.dot(x_all, w, preferred_element_type=jnp.float32)

    for b in range(B):                                   # B tiny & static -> unrolled
        adj = adj_ref[b]                                 # (N, H*N)
        support = support_all[b * N:(b + 1) * N]         # (N, H*Fout), sublane-aligned slice

        # Degrees for all heads at once, already broadcast across each head's
        # Fout lanes: (adj @ mask)[n, h*Fout+o] = sum_k adj[b,h,n,k].
        # Exact: adj entries are small integers (bf16/f32-representable sums).
        deg = jnp.dot(adj, mask, preferred_element_type=jnp.float32)
        d = jax.lax.rsqrt(deg)        # deg ** -0.5 (inf if deg == 0, same as reference)

        scaled = d * support                             # (N, H*Fout)
        # Block-diagonal RHS: rhs[h*N+k, g*Fout+o] = (h==g) * scaled[k, g*Fout+o]
        rhs = jnp.tile(scaled, (H, 1)) * mask            # (H*N, H*Fout)
        # One fused aggregation matmul for all heads (256-deep contraction).
        agg = jnp.dot(adj, rhs, preferred_element_type=jnp.float32)   # (N, H*Fout)

        out_ref[b] = (d * agg + bias).astype(out_ref.dtype)


def prepare_params(weight, bias, num_nodes):
    """Hoist parameter-derived constants out of the per-forward path (built once)."""
    H, Fin, Fout = weight.shape
    # Block-diagonal weight: w_bd[h*Fin+i, g*Fout+o] = weight[h,i,o] * (h==g)
    eye_h = jnp.eye(H, dtype=weight.dtype)
    w_bd = (weight[:, :, None, :] * eye_h[:, None, :, None]).reshape(H * Fin, H * Fout)
    # 0/1 head-expansion mask: mask[h*N+k, g*Fout+o] = (h == g)
    mask = jnp.kron(jnp.eye(H, dtype=jnp.float32),
                    jnp.ones((num_nodes, Fout), jnp.float32))
    # Bias tiled once per head so it adds directly onto the packed lanes.
    bias_packed = jnp.tile(bias, (H,)).reshape(1, H * Fout)
    return w_bd, mask, bias_packed


@jax.jit
def graph_convolution(x, adj, w_bd, mask, bias_packed):
    B, H, N, Fin = x.shape
    HFout = w_bd.shape[-1]
    Fout = HFout // H
    HFin, HN = H * Fin, H * N

    # Lane-dense packing (fused into the surrounding jit):
    #   x_packed[b, n, h*Fin + i]  = x[b, h, n, i]
    #   adj_packed[b, n, h*N + k]  = adj[b, h, n, k]
    x_packed = jnp.transpose(x, (0, 2, 1, 3)).reshape(B, N, HFin)
    adj_packed = jnp.transpose(adj, (0, 2, 1, 3)).reshape(B, N, HN)

    out_packed = pl.pallas_call(
        gcn_kernel,
        out_shape=jax.ShapeDtypeStruct((B, N, HFout), x.dtype),
        grid_spec=pl.GridSpec(
            grid=(1,),                                   # single step: everything at once
            in_specs=[
                pl.BlockSpec((B, N, HFin), lambda i: (0, 0, 0)),
                pl.BlockSpec((B, N, HN), lambda i: (0, 0, 0)),
                pl.BlockSpec((HFin, HFout), lambda i: (0, 0)),
                pl.BlockSpec((HN, HFout), lambda i: (0, 0)),
                pl.BlockSpec((1, HFout), lambda i: (0, 0)),
            ],
            out_specs=pl.BlockSpec((B, N, HFout), lambda i: (0, 0, 0)),
        ),
        compiler_params=pltpu.CompilerParams(
            dimension_semantics=("arbitrary",),
        ),
    )(x_packed, adj_packed, w_bd, mask, bias_packed)

    # Unpack lanes back to the module's (B, H, N, Fout) layout.
    return jnp.transpose(out_packed.reshape(B, N, H, Fout), (0, 2, 1, 3))


def reference(x, adj, weight, bias):
    # Pure-JAX reference mirroring the PyTorch forward.
    support = jnp.einsum("bhnk,hkf->bhnf", x, weight)
    deg = jnp.sum(adj, axis=-1)                      # (B, H, N)
    d = jnp.power(deg, -0.5)
    d_diag = jax.vmap(jax.vmap(jnp.diag))(d)         # (B, H, N, N)
    norm_adj = d_diag @ adj @ d_diag
    return norm_adj @ support + bias


if __name__ == "__main__":
    # Module hyper-parameters (small, consistent with the forward):
    in_features, out_features, head_num = 32, 32, 4
    image_size, patch_size = 32, 4
    B = 2
    N = (image_size // patch_size) ** 2              # 64 nodes (patches)
    Fin = in_features // head_num                    # 8
    Fout = out_features // head_num                  # 8

    key = jax.random.PRNGKey(0)
    k_w, k_b, k_x, k_adj = jax.random.split(key, 4)

    # Deterministic parameter init mirroring reset_parameters (uniform ±stdv).
    stdv = 1.0 / math.sqrt(Fin)
    weight = jax.random.uniform(k_w, (head_num, Fin, Fout), jnp.float32, -stdv, stdv)
    bias = jax.random.uniform(k_b, (Fout,), jnp.float32, -stdv, stdv)

    # Inputs: node features and a (positive-degree) adjacency tensor.
    x = jax.random.uniform(k_x, (B, head_num, N, Fin), jnp.float32)
    adj = (jax.random.uniform(k_adj, (B, head_num, N, N)) > 0.7).astype(jnp.float32)
    adj = adj + jnp.eye(N, dtype=jnp.float32)[None, None]   # self-loops -> deg > 0

    # Parameter-derived constants built once (not per forward call).
    w_bd, mask, bias_packed = prepare_params(weight, bias, N)

    out = graph_convolution(x, adj, w_bd, mask, bias_packed)
    out = jax.block_until_ready(out)

    ref = reference(x, adj, weight, bias)
    assert out.shape == (B, head_num, N, Fout)
    assert jnp.allclose(out, ref, atol=1e-4, rtol=1e-4)

    print("KERNEL_OK")
</pallas_src>

<mosaic_0001>
module attributes {stable_mosaic.version = 11 : i64} {
  func.func @gcn_kernel(%arg0: i32, %arg1: memref<2x64x32xf32, #tpu.memory_space<vmem>>, %arg2: memref<2x64x256xf32, #tpu.memory_space<vmem>>, %arg3: memref<32x32xf32, #tpu.memory_space<vmem>>, %arg4: memref<256x32xf32, #tpu.memory_space<vmem>>, %arg5: memref<1x32xf32, #tpu.memory_space<vmem>>, %arg6: memref<2x64x32xf32, #tpu.memory_space<vmem>>) attributes {dimension_semantics = [#tpu.dimension_semantics<arbitrary>], iteration_bounds = array<i64: 1>, scalar_prefetch = 0 : i64, scratch_operands = 0 : i64, tpu.core_type = #tpu.core_type<tc>, window_params = [{pipeline_mode = #tpu.pipeline_mode<synchronous>, transform_indices = @transform_0, window_bounds = array<i64: 2, 64, 32>}, {pipeline_mode = #tpu.pipeline_mode<synchronous>, transform_indices = @transform_1, window_bounds = array<i64: 2, 64, 256>}, {pipeline_mode = #tpu.pipeline_mode<synchronous>, transform_indices = @transform_2, window_bounds = array<i64: 32, 32>}, {pipeline_mode = #tpu.pipeline_mode<synchronous>, transform_indices = @transform_3, window_bounds = array<i64: 256, 32>}, {pipeline_mode = #tpu.pipeline_mode<synchronous>, transform_indices = @transform_4, window_bounds = array<i64: 1, 32>}, {pipeline_mode = #tpu.pipeline_mode<synchronous>, transform_indices = @transform_5, window_bounds = array<i64: 2, 64, 32>}]} {
    %c0 = arith.constant 0 : index
    %c0_0 = arith.constant 0 : index
    %0 = vector.load %arg3[%c0, %c0_0] : memref<32x32xf32, #tpu.memory_space<vmem>>, vector<32x32xf32>
    %c0_1 = arith.constant 0 : index
    %c0_2 = arith.constant 0 : index
    %1 = vector.load %arg4[%c0_1, %c0_2] : memref<256x32xf32, #tpu.memory_space<vmem>>, vector<256x32xf32>
    %c0_3 = arith.constant 0 : index
    %c0_4 = arith.constant 0 : index
    %2 = vector.load %arg5[%c0_3, %c0_4] : memref<1x32xf32, #tpu.memory_space<vmem>>, vector<1x32xf32>
    %c0_5 = arith.constant 0 : index
    %c0_6 = arith.constant 0 : index
    %c0_7 = arith.constant 0 : index
    %3 = vector.load %arg1[%c0_5, %c0_6, %c0_7] : memref<2x64x32xf32, #tpu.memory_space<vmem>>, vector<2x64x32xf32>
    %4 = vector.shape_cast %3 : vector<2x64x32xf32> to vector<128x32xf32>
    %cst = arith.constant dense<0.000000e+00> : vector<128x32xf32>
    %5 = tpu.matmul %4, %0, %cst {dimension_numbers = #tpu.dot_dimension_numbers<[1], [0], [0], [1], [0, 0, 1, 1], [], []>} : vector<128x32xf32>, vector<32x32xf32>, vector<128x32xf32> -> vector<128x32xf32>
    %c0_8 = arith.constant 0 : index
    %c0_9 = arith.constant 0 : index
    %c0_10 = arith.constant 0 : index
    %6 = vector.load %arg2[%c0_8, %c0_9, %c0_10] : memref<2x64x256xf32, #tpu.memory_space<vmem>>, vector<1x64x256xf32>
    %7 = vector.shape_cast %6 : vector<1x64x256xf32> to vector<64x256xf32>
    %8 = vector.extract_strided_slice %5 {offsets = [0, 0], sizes = [64, 32], strides = [1, 1]} : vector<128x32xf32> to vector<64x32xf32>
    %cst_11 = arith.constant dense<0.000000e+00> : vector<64x32xf32>
    %9 = tpu.matmul %7, %1, %cst_11 {dimension_numbers = #tpu.dot_dimension_numbers<[1], [0], [0], [1], [0, 0, 1, 1], [], []>} : vector<64x256xf32>, vector<256x32xf32>, vector<64x32xf32> -> vector<64x32xf32>
    %10 = math.rsqrt %9 : vector<64x32xf32>
    %11 = arith.mulf %10, %8 : vector<64x32xf32>
    %12 = tpu.concatenate %11, %11, %11, %11 in 0 : vector<64x32xf32>, vector<64x32xf32>, vector<64x32xf32>, vector<64x32xf32> -> vector<256x32xf32>
    %13 = arith.mulf %12, %1 : vector<256x32xf32>
    %cst_12 = arith.constant dense<0.000000e+00> : vector<64x32xf32>
    %14 = tpu.matmul %7, %13, %cst_12 {dimension_numbers = #tpu.dot_dimension_numbers<[1], [0], [0], [1], [0, 0, 1, 1], [], []>} : vector<64x256xf32>, vector<256x32xf32>, vector<64x32xf32> -> vector<64x32xf32>
    %15 = arith.mulf %10, %14 : vector<64x32xf32>
    %16 = vector.broadcast %2 : vector<1x32xf32> to vector<64x32xf32>
    %17 = arith.addf %15, %16 : vector<64x32xf32>
    %c0_13 = arith.constant 0 : index
    %c0_14 = arith.constant 0 : index
    %c0_15 = arith.constant 0 : index
    %18 = vector.load %arg6[%c0_13, %c0_14, %c0_15] : memref<2x64x32xf32, #tpu.memory_space<vmem>>, vector<1x64x32xf32>
    %19 = vector.shape_cast %18 : vector<1x64x32xf32> to vector<64x32xf32>
    %20 = vector.shape_cast %17 : vector<64x32xf32> to vector<1x64x32xf32>
    tpu.vector_store %arg6[%c0_13, %c0_14, %c0_15], %20 {strides = array<i32>} : memref<2x64x32xf32, #tpu.memory_space<vmem>>, vector<1x64x32xf32>,
    %c1 = arith.constant 1 : index
    %c0_16 = arith.constant 0 : index
    %c0_17 = arith.constant 0 : index
    %21 = vector.load %arg2[%c1, %c0_16, %c0_17] : memref<2x64x256xf32, #tpu.memory_space<vmem>>, vector<1x64x256xf32>
    %22 = vector.shape_cast %21 : vector<1x64x256xf32> to vector<64x256xf32>
    %23 = vector.extract_strided_slice %5 {offsets = [64, 0], sizes = [64, 32], strides = [1, 1]} : vector<128x32xf32> to vector<64x32xf32>
    %cst_18 = arith.constant dense<0.000000e+00> : vector<64x32xf32>
    %24 = tpu.matmul %22, %1, %cst_18 {dimension_numbers = #tpu.dot_dimension_numbers<[1], [0], [0], [1], [0, 0, 1, 1], [], []>} : vector<64x256xf32>, vector<256x32xf32>, vector<64x32xf32> -> vector<64x32xf32>
    %25 = math.rsqrt %24 : vector<64x32xf32>
    %26 = arith.mulf %25, %23 : vector<64x32xf32>
    %27 = tpu.concatenate %26, %26, %26, %26 in 0 : vector<64x32xf32>, vector<64x32xf32>, vector<64x32xf32>, vector<64x32xf32> -> vector<256x32xf32>
    %28 = arith.mulf %27, %1 : vector<256x32xf32>
    %cst_19 = arith.constant dense<0.000000e+00> : vector<64x32xf32>
    %29 = tpu.matmul %22, %28, %cst_19 {dimension_numbers = #tpu.dot_dimension_numbers<[1], [0], [0], [1], [0, 0, 1, 1], [], []>} : vector<64x256xf32>, vector<256x32xf32>, vector<64x32xf32> -> vector<64x32xf32>
    %30 = arith.mulf %25, %29 : vector<64x32xf32>
    %31 = vector.broadcast %2 : vector<1x32xf32> to vector<64x32xf32>
    %32 = arith.addf %30, %31 : vector<64x32xf32>
    %c1_20 = arith.constant 1 : index
    %c0_21 = arith.constant 0 : index
    %c0_22 = arith.constant 0 : index
    %33 = vector.load %arg6[%c1_20, %c0_21, %c0_22] : memref<2x64x32xf32, #tpu.memory_space<vmem>>, vector<1x64x32xf32>
    %34 = vector.shape_cast %33 : vector<1x64x32xf32> to vector<64x32xf32>
    %35 = vector.shape_cast %32 : vector<64x32xf32> to vector<1x64x32xf32>
    tpu.vector_store %arg6[%c1_20, %c0_21, %c0_22], %35 {strides = array<i32>} : memref<2x64x32xf32, #tpu.memory_space<vmem>>, vector<1x64x32xf32>,
    return
  }
  func.func @transform_0(%arg0: i32) -> (i32, i32, i32) {
    %c0_i32 = arith.constant 0 : i32
    %c0_i32_0 = arith.constant 0 : i32
    %c0_i32_1 = arith.constant 0 : i32
    %c0_i32_2 = arith.constant 0 : i32
    return %c0_i32, %c0_i32_0, %c0_i32_1 : i32, i32, i32
  }
  func.func @transform_1(%arg0: i32) -> (i32, i32, i32) {
    %c0_i32 = arith.constant 0 : i32
    %c0_i32_0 = arith.constant 0 : i32
    %c0_i32_1 = arith.constant 0 : i32
    %c0_i32_2 = arith.constant 0 : i32
    return %c0_i32, %c0_i32_0, %c0_i32_1 : i32, i32, i32
  }
  func.func @transform_2(%arg0: i32) -> (i32, i32) {
    %c0_i32 = arith.constant 0 : i32
    %c0_i32_0 = arith.constant 0 : i32
    %c0_i32_1 = arith.constant 0 : i32
    return %c0_i32, %c0_i32_0 : i32, i32
  }
  func.func @transform_3(%arg0: i32) -> (i32, i32) {
    %c0_i32 = arith.constant 0 : i32
    %c0_i32_0 = arith.constant 0 : i32
    %c0_i32_1 = arith.constant 0 : i32
    return %c0_i32, %c0_i32_0 : i32, i32
  }
  func.func @transform_4(%arg0: i32) -> (i32, i32) {
    %c0_i32 = arith.constant 0 : i32
    %c0_i32_0 = arith.constant 0 : i32
    %c0_i32_1 = arith.constant 0 : i32
    return %c0_i32, %c0_i32_0 : i32, i32
  }
  func.func @transform_5(%arg0: i32) -> (i32, i32, i32) {
    %c0_i32 = arith.constant 0 : i32
    %c0_i32_0 = arith.constant 0 : i32
    %c0_i32_1 = arith.constant 0 : i32
    %c0_i32_2 = arith.constant 0 : i32
    return %c0_i32, %c0_i32_0, %c0_i32_1 : i32, i32, i32
  }
}

</mosaic_0001>

<llo_original>
// kernel: graph_convolution.1
$region0: #{graph_convolution.1}
  #allocation0 [shape = 'u32[]', space=smem, size = 0x4, offset = 0x4, fixed_abs, tag = 'smem constant byte address 0x4 - core index']
  #allocation1 [shape = 'u32[144,128]{1,0:T(1,128)}', space=vmem, size = 0x12000, scoped, tag = 'internal scratch']
  %s0 = inlined_call_operand.vmem [shape: f32[2,64,32], index: 0, kind: input, shape index: {}]
  %s1 = inlined_call_operand.vmem [shape: f32[2,64,256], index: 1, kind: input, shape index: {}]
  %s2 = inlined_call_operand.vmem [shape: f32[32,32], index: 2, kind: input, shape index: {}]
  %s3 = inlined_call_operand.vmem [shape: f32[256,32], index: 3, kind: input, shape index: {}]
  %s4 = inlined_call_operand.vmem [shape: f32[1,32], index: 4, kind: input, shape index: {}]
  %s5 = inlined_call_operand.vmem [shape: f32[2,64,32], index: 5, kind: output, shape index: {}]
  %s6 = sld [smem:[#allocation0]]
  $region30: #{graph_convolution.1} parent=0
    _
  %s8 = ssub.s32 1, %s6
  %s9 = scalar_select 0, %s8, %s6
  // Predicated region
  $region2: #{graph_convolution.1} parent=0 // pred_check
    _
  $region3: #{graph_convolution.1} parent=0 // pred_check_branch
    %11 = sbr.rel (0) target = $region5
  $region4: #{graph_convolution.1} parent=0 // pred_region
    _
  $region5: #{graph_convolution.1} parent=0 // pred_fallthru
    _
  // Predicated region
  $region6: #{graph_convolution.1} parent=0 // pred_check
    _
  $region7: #{graph_convolution.1} parent=0 // pred_check_branch
    %13 = sbr.rel (0) target = $region9
  $region8: #{graph_convolution.1} parent=0 // pred_region
    _
  $region9: #{graph_convolution.1} parent=0 // pred_fallthru
    _
  // Predicated region
  $region10: #{graph_convolution.1} parent=0 // pred_check
    _
  $region11: #{graph_convolution.1} parent=0 // pred_check_branch
    %15 = sbr.rel (0) target = $region13
  $region12: #{graph_convolution.1} parent=0 // pred_region
    _
  $region13: #{graph_convolution.1} parent=0 // pred_fallthru
    _
  // Predicated region
  $region14: #{graph_convolution.1} parent=0 // pred_check
    _
  $region15: #{graph_convolution.1} parent=0 // pred_check_branch
    %17 = sbr.rel (0) target = $region17
  $region16: #{graph_convolution.1} parent=0 // pred_region
    _
  $region17: #{graph_convolution.1} parent=0 // pred_fallthru
    _
  // Predicated region
  $region18: #{graph_convolution.1} parent=0 // pred_check
    _
  $region19: #{graph_convolution.1} parent=0 // pred_check_branch
    %19 = sbr.rel (0) target = $region21
  $region20: #{graph_convolution.1} parent=0 // pred_region
    _
  $region21: #{graph_convolution.1} parent=0 // pred_fallthru
    _
  %v20 = vld [vmem:[%s2] sm:$0xff]
  %v21 = vld [vmem:[%s2 + $0x8] sm:$0xff]
  %v22 = vld [vmem:[%s2 + $0x10] sm:$0xff]
  %v23 = vld [vmem:[%s2 + $0x18] sm:$0xff]
  %v24 = vld [vmem:[%s3] sm:$0xff]
  %v25 = vld [vmem:[%s3 + $0x8] sm:$0xff]
  %v26 = vld [vmem:[%s3 + $0x10] sm:$0xff]
  %v27 = vld [vmem:[%s3 + $0x18] sm:$0xff]
  %v28 = vld [vmem:[%s3 + $0x20] sm:$0xff]
  %v29 = vld [vmem:[%s3 + $0x28] sm:$0xff]
  %v30 = vld [vmem:[%s3 + $0x30] sm:$0xff]
  %v31 = vld [vmem:[%s3 + $0x38] sm:$0xff]
  %v32 = vld [vmem:[%s3 + $0x40] sm:$0xff]
  %v33 = vld [vmem:[%s3 + $0x48] sm:$0xff]
  %v34 = vld [vmem:[%s3 + $0x50] sm:$0xff]
  %v35 = vld [vmem:[%s3 + $0x58] sm:$0xff]
  %v36 = vld [vmem:[%s3 + $0x60] sm:$0xff]
  %v37 = vld [vmem:[%s3 + $0x68] sm:$0xff]
  %v38 = vld [vmem:[%s3 + $0x70] sm:$0xff]
  %v39 = vld [vmem:[%s3 + $0x78] sm:$0xff]
  %v40 = vld [vmem:[%s3 + $0x80] sm:$0xff]
  %v41 = vld [vmem:[%s3 + $0x88] sm:$0xff]
  %v42 = vld [vmem:[%s3 + $0x90] sm:$0xff]
  %v43 = vld [vmem:[%s3 + $0x98] sm:$0xff]
  %v44 = vld [vmem:[%s3 + $0xa0] sm:$0xff]
  %v45 = vld [vmem:[%s3 + $0xa8] sm:$0xff]
  %v46 = vld [vmem:[%s3 + $0xb0] sm:$0xff]
  %v47 = vld [vmem:[%s3 + $0xb8] sm:$0xff]
  %v48 = vld [vmem:[%s3 + $0xc0] sm:$0xff]
  %v49 = vld [vmem:[%s3 + $0xc8] sm:$0xff]
  %v50 = vld [vmem:[%s3 + $0xd0] sm:$0xff]
  %v51 = vld [vmem:[%s3 + $0xd8] sm:$0xff]
  %v52 = vld [vmem:[%s3 + $0xe0] sm:$0xff]
  %v53 = vld [vmem:[%s3 + $0xe8] sm:$0xff]
  %v54 = vld [vmem:[%s3 + $0xf0] sm:$0xff]
  %v55 = vld [vmem:[%s3 + $0xf8] sm:$0xff]
  %v56 = vld [vmem:[%s4] sm:$0x1]
  %v57 = vld [vmem:[%s0] sm:$0xff]
  %v58 = vld [vmem:[%s0 + $0x8] sm:$0xff]
  %v59 = vld [vmem:[%s0 + $0x10] sm:$0xff]
  %v60 = vld [vmem:[%s0 + $0x18] sm:$0xff]
  %v61 = vld [vmem:[%s0 + $0x20] sm:$0xff]
  %v62 = vld [vmem:[%s0 + $0x28] sm:$0xff]
  %v63 = vld [vmem:[%s0 + $0x30] sm:$0xff]
  %v64 = vld [vmem:[%s0 + $0x38] sm:$0xff]
  %v65 = vld [vmem:[%s0 + $0x40] sm:$0xff]
  %v66 = vld [vmem:[%s0 + $0x48] sm:$0xff]
  %v67 = vld [vmem:[%s0 + $0x50] sm:$0xff]
  %v68 = vld [vmem:[%s0 + $0x58] sm:$0xff]
  %v69 = vld [vmem:[%s0 + $0x60] sm:$0xff]
  %v70 = vld [vmem:[%s0 + $0x68] sm:$0xff]
  %v71 = vld [vmem:[%s0 + $0x70] sm:$0xff]
  %v72 = vld [vmem:[%s0 + $0x78] sm:$0xff]
  %vm73 = vcmask 261120
  %v75 = vsel %vm73, %v57, 0
  %v78 = vsel %vm73, %v58, 0
  %v81 = vsel %vm73, %v59, 0
  %v84 = vsel %vm73, %v60, 0
  %v87 = vsel %vm73, %v61, 0
  %v90 = vsel %vm73, %v62, 0
  %v93 = vsel %vm73, %v63, 0
  %v96 = vsel %vm73, %v64, 0
  %v99 = vsel %vm73, %v65, 0
  %v102 = vsel %vm73, %v66, 0
  %v105 = vsel %vm73, %v67, 0
  %v108 = vsel %vm73, %v68, 0
  %v111 = vsel %vm73, %v69, 0
  %v114 = vsel %vm73, %v70, 0
  %v117 = vsel %vm73, %v71, 0
  %v120 = vsel %vm73, %v72, 0
  %122 = vmatprep.subr.mxu0 0.0
  %123 = vmatpush1.msra.mxu0 %v20
  %124 = vmatprep.subr.mxu0 0.0
  %125 = vmatpush1.msra.mxu0 %v21
  %126 = vmatprep.subr.mxu0 0.0
  %127 = vmatpush1.msra.mxu0 %v22
  %128 = vmatprep.subr.mxu0 0.0
  %129 = vmatpush1.msra.mxu0 %v23
  %130 = vmatprep.subr.mxu0 0.0
  %131 = vmatpush1.msra.mxu0 0.0
  %132 = vmatprep.subr.mxu0 0.0
  %133 = vmatpush1.msra.mxu0 0.0
  %134 = vmatprep.subr.mxu0 0.0
  %135 = vmatpush1.msra.mxu0 0.0
  %136 = vmatprep.subr.mxu0 0.0
  %137 = vmatpush1.msra.mxu0 0.0
  %138 = vmatprep.subr.mxu0 0.0
  %139 = vmatpush1.msra.mxu0 0.0
  %140 = vmatprep.subr.mxu0 0.0
  %141 = vmatpush1.msra.mxu0 0.0
  %142 = vmatprep.subr.mxu0 0.0
  %143 = vmatpush1.msra.mxu0 0.0
  %144 = vmatprep.subr.mxu0 0.0
  %145 = vmatpush1.msra.mxu0 0.0
  %146 = vmatprep.subr.mxu0 0.0
  %147 = vmatpush1.msra.mxu0 0.0
  %148 = vmatprep.subr.mxu0 0.0
  %149 = vmatpush1.msra.mxu0 0.0
  %150 = vmatprep.subr.mxu0 0.0
  %151 = vmatpush1.msra.mxu0 0.0
  %152 = vmatprep.subr.mxu0 0.0
  %153 = vmatpush1.msra.mxu0 0.0
  %154 = vmatprep.subr.mxu0 0.0
  %155 = vmatpush1.msra.mxu0 0.0
  %156 = vmatprep.subr.mxu0 0.0
  %157 = vmatpush1.msra.mxu0 0.0
  %158 = vmatprep.subr.mxu0 0.0
  %159 = vmatpush1.msra.mxu0 0.0
  %160 = vmatprep.subr.mxu0 0.0
  %161 = vmatpush1.msra.mxu0 0.0
  %162 = vmatprep.subr.mxu0 0.0
  %163 = vmatpush1.msra.mxu0 0.0
  %164 = vmatprep.subr.mxu0 0.0
  %165 = vmatpush1.msra.mxu0 0.0
  %166 = vmatprep.subr.mxu0 0.0
  %167 = vmatpush1.msra.mxu0 0.0
  %168 = vmatprep.subr.mxu0 0.0
  %169 = vmatpush1.msra.mxu0 0.0
  %170 = vmatprep.subr.mxu0 0.0
  %171 = vmatpush1.msra.mxu0 0.0
  %172 = vmatprep.subr.mxu0 0.0
  %173 = vmatpush1.msra.mxu0 0.0
  %174 = vmatprep.subr.mxu0 0.0
  %175 = vmatpush1.msra.mxu0 0.0
  %176 = vmatprep.subr.mxu0 0.0
  %177 = vmatpush1.msra.mxu0 0.0
  %178 = vmatprep.subr.mxu0 0.0
  %179 = vmatpush1.msra.mxu0 0.0
  %180 = vmatprep.subr.mxu0 0.0
  %181 = vmatpush1.msra.mxu0 0.0
  %182 = vmatprep.subr.mxu0 0.0
  %183 = vmatpush1.msra.mxu0 0.0
  %184 = vmatprep.subr.mxu0 0.0
  %185 = vmatpush1.msra.mxu0 0.0
  %186 = vmatprep.mubr.f32.mxu0 0.0
  %187 = vmatmul.mubr.f32.gmra.mrb[0].mxu0 %v75
  %v188 = vpop.f32.mrb[0].mxu0
  %v189 = vadd.f32 0.0, %v188
  %v190 = vpop.f32.mrb[0].mxu0
  %191 = vmatprep.mubr.f32.mxu0 0.0
  %192 = vmatmul.mubr.f32.gmra.mrb[0].mxu0 %v78
  %v193 = vpop.f32.mrb[0].mxu0
  %v194 = vadd.f32 0.0, %v193
  %v195 = vpop.f32.mrb[0].mxu0
  %196 = vmatprep.mubr.f32.mxu0 0.0
  %197 = vmatmul.mubr.f32.gmra.mrb[0].mxu0 %v81
  %v198 = vpop.f32.mrb[0].mxu0
  %v199 = vadd.f32 0.0, %v198
  %v200 = vpop.f32.mrb[0].mxu0
  %201 = vmatprep.mubr.f32.mxu0 0.0
  %202 = vmatmul.mubr.f32.gmra.mrb[0].mxu0 %v84
  %v203 = vpop.f32.mrb[0].mxu0
  %v204 = vadd.f32 0.0, %v203
  %v205 = vpop.f32.mrb[0].mxu0
  %206 = vmatprep.mubr.f32.mxu0 0.0
  %207 = vmatmul.mubr.f32.gmra.mrb[0].mxu0 %v87
  %v208 = vpop.f32.mrb[0].mxu0
  %v209 = vadd.f32 0.0, %v208
  %v210 = vpop.f32.mrb[0].mxu0
  %211 = vmatprep.mubr.f32.mxu0 0.0
  %212 = vmatmul.mubr.f32.gmra.mrb[0].mxu0 %v90
  %v213 = vpop.f32.mrb[0].mxu0
  %v214 = vadd.f32 0.0, %v213
  %v215 = vpop.f32.mrb[0].mxu0
  %216 = vmatprep.mubr.f32.mxu0 0.0
  %217 = vmatmul.mubr.f32.gmra.mrb[0].mxu0 %v93
  %v218 = vpop.f32.mrb[0].mxu0
  %v219 = vadd.f32 0.0, %v218
  %v220 = vpop.f32.mrb[0].mxu0
  %221 = vmatprep.mubr.f32.mxu0 0.0
  %222 = vmatmul.mubr.f32.gmra.mrb[0].mxu0 %v96
  %v223 = vpop.f32.mrb[0].mxu0
  %v224 = vadd.f32 0.0, %v223
  %v225 = vpop.f32.mrb[0].mxu0
  %226 = vmatprep.mubr.f32.mxu0 0.0
  %227 = vmatmul.mubr.f32.gmra.mrb[0].mxu0 %v99
  %v228 = vpop.f32.mrb[0].mxu0
  %v229 = vadd.f32 0.0, %v228
  %v230 = vpop.f32.mrb[0].mxu0
  %231 = vmatprep.mubr.f32.mxu0 0.0
  %232 = vmatmul.mubr.f32.gmra.mrb[0].mxu0 %v102
  %v233 = vpop.f32.mrb[0].mxu0
  %v234 = vadd.f32 0.0, %v233
  %v235 = vpop.f32.mrb[0].mxu0
  %236 = vmatprep.mubr.f32.mxu0 0.0
  %237 = vmatmul.mubr.f32.gmra.mrb[0].mxu0 %v105
  %v238 = vpop.f32.mrb[0].mxu0
  %v239 = vadd.f32 0.0, %v238
  %v240 = vpop.f32.mrb[0].mxu0
  %241 = vmatprep.mubr.f32.mxu0 0.0
  %242 = vmatmul.mubr.f32.gmra.mrb[0].mxu0 %v108
  %v243 = vpop.f32.mrb[0].mxu0
  %v244 = vadd.f32 0.0, %v243
  %v245 = vpop.f32.mrb[0].mxu0
  %246 = vmatprep.mubr.f32.mxu0 0.0
  %247 = vmatmul.mubr.f32.gmra.mrb[0].mxu0 %v111
  %v248 = vpop.f32.mrb[0].mxu0
  %v249 = vadd.f32 0.0, %v248
  %v250 = vpop.f32.mrb[0].mxu0
  %251 = vmatprep.mubr.f32.mxu0 0.0
  %252 = vmatmul.mubr.f32.gmra.mrb[0].mxu0 %v114
  %v253 = vpop.f32.mrb[0].mxu0
  %v254 = vadd.f32 0.0, %v253
  %v255 = vpop.f32.mrb[0].mxu0
  %256 = vmatprep.mubr.f32.mxu0 0.0
  %257 = vmatmul.mubr.f32.gmra.mrb[0].mxu0 %v117
  %v258 = vpop.f32.mrb[0].mxu0
  %v259 = vadd.f32 0.0, %v258
  %v260 = vpop.f32.mrb[0].mxu0
  %261 = vmatprep.mubr.f32.mxu0 0.0
  %262 = vmatmul.mubr.f32.gmra.mrb[0].mxu0 %v120
  %v263 = vpop.f32.mrb[0].mxu0
  %v264 = vadd.f32 0.0, %v263
  %v265 = vpop.f32.mrb[0].mxu0
  %266 = vdwg.mxu0
  %v267 = vld [vmem:[%s1] sm:$0xff]
  %v268 = vld [vmem:[%s1 + $0x8] sm:$0xff]
  %v269 = vld [vmem:[%s1 + $0x10] sm:$0xff]
  %v270 = vld [vmem:[%s1 + $0x18] sm:$0xff]
  %v271 = vld [vmem:[%s1 + $0x20] sm:$0xff]
  %v272 = vld [vmem:[%s1 + $0x28] sm:$0xff]
  %v273 = vld [vmem:[%s1 + $0x30] sm:$0xff]
  %v274 = vld [vmem:[%s1 + $0x38] sm:$0xff]
  %v275 = vld [vmem:[%s1 + $0x40] sm:$0xff]
  %v276 = vld [vmem:[%s1 + $0x48] sm:$0xff]
  %v277 = vld [vmem:[%s1 + $0x50] sm:$0xff]
  %v278 = vld [vmem:[%s1 + $0x58] sm:$0xff]
  %v279 = vld [vmem:[%s1 + $0x60] sm:$0xff]
  %v280 = vld [vmem:[%s1 + $0x68] sm:$0xff]
  %v281 = vld [vmem:[%s1 + $0x70] sm:$0xff]
  %v282 = vld [vmem:[%s1 + $0x78] sm:$0xff]
  %283 = vmatprep.subr.mxu0 0.0
  %284 = vmatpush1.msra.mxu0 %v24
  %285 = vmatprep.subr.mxu0 0.0
  %286 = vmatpush1.msra.mxu0 %v25
  %287 = vmatprep.subr.mxu0 0.0
  %288 = vmatpush1.msra.mxu0 %v26
  %289 = vmatprep.subr.mxu0 0.0
  %290 = vmatpush1.msra.mxu0 %v27
  %291 = vmatprep.subr.mxu0 0.0
  %292 = vmatpush1.msra.mxu0 %v28
  %293 = vmatprep.subr.mxu0 0.0
  %294 = vmatpush1.msra.mxu0 %v29
  %295 = vmatprep.subr.mxu0 0.0
  %296 = vmatpush1.msra.mxu0 %v30
  %297 = vmatprep.subr.mxu0 0.0
  %298 = vmatpush1.msra.mxu0 %v31
  %299 = vmatprep.subr.mxu0 0.0
  %300 = vmatpush1.msra.mxu0 %v32
  %301 = vmatprep.subr.mxu0 0.0
  %302 = vmatpush1.msra.mxu0 %v33
  %303 = vmatprep.subr.mxu0 0.0
  %304 = vmatpush1.msra.mxu0 %v34
  %305 = vmatprep.subr.mxu0 0.0
  %306 = vmatpush1.msra.mxu0 %v35
  %307 = vmatprep.subr.mxu0 0.0
  %308 = vmatpush1.msra.mxu0 %v36
  %309 = vmatprep.subr.mxu0 0.0
  %310 = vmatpush1.msra.mxu0 %v37
  %311 = vmatprep.subr.mxu0 0.0
  %312 = vmatpush1.msra.mxu0 %v38
  %313 = vmatprep.subr.mxu0 0.0
  %314 = vmatpush1.msra.mxu0 %v39
  %315 = vmatprep.subr.mxu0 0.0
  %316 = vmatpush1.msra.mxu0 %v40
  %317 = vmatprep.subr.mxu0 0.0
  %318 = vmatpush1.msra.mxu0 %v41
  %319 = vmatprep.subr.mxu0 0.0
  %320 = vmatpush1.msra.mxu0 %v42
  %321 = vmatprep.subr.mxu0 0.0
  %322 = vmatpush1.msra.mxu0 %v43
  %323 = vmatprep.subr.mxu0 0.0
  %324 = vmatpush1.msra.mxu0 %v44
  %325 = vmatprep.subr.mxu0 0.0
  %326 = vmatpush1.msra.mxu0 %v45
  %327 = vmatprep.subr.mxu0 0.0
  %328 = vmatpush1.msra.mxu0 %v46
  %329 = vmatprep.subr.mxu0 0.0
  %330 = vmatpush1.msra.mxu0 %v47
  %331 = vmatprep.subr.mxu0 0.0
  %332 = vmatpush1.msra.mxu0 %v48
  %333 = vmatprep.subr.mxu0 0.0
  %334 = vmatpush1.msra.mxu0 %v49
  %335 = vmatprep.subr.mxu0 0.0
  %336 = vmatpush1.msra.mxu0 %v50
  %337 = vmatprep.subr.mxu0 0.0
  %338 = vmatpush1.msra.mxu0 %v51
  %339 = vmatprep.subr.mxu0 0.0
  %340 = vmatpush1.msra.mxu0 %v52
  %341 = vmatprep.subr.mxu0 0.0
  %342 = vmatpush1.msra.mxu0 %v53
  %343 = vmatprep.subr.mxu0 0.0
  %344 = vmatpush1.msra.mxu0 %v54
  %345 = vmatprep.subr.mxu0 0.0
  %346 = vmatpush1.msra.mxu0 %v55
  %347 = vmatprep.mubr.f32.mxu0 %v268
  %348 = vmatmul.mubr.f32.gmra.mrb[0].mxu0 %v267
  %v349 = vpop.f32.mrb[0].mxu0
  %v350 = vadd.f32 0.0, %v349
  %v351 = vpop.f32.mrb[0].mxu0
  %352 = vmatprep.mubr.f32.mxu0 %v270
  %353 = vmatmul.mubr.f32.gmra.mrb[0].mxu0 %v269
  %v354 = vpop.f32.mrb[0].mxu0
  %v355 = vadd.f32 0.0, %v354
  %v356 = vpop.f32.mrb[0].mxu0
  %357 = vmatprep.mubr.f32.mxu0 %v272
  %358 = vmatmul.mubr.f32.gmra.mrb[0].mxu0 %v271
  %v359 = vpop.f32.mrb[0].mxu0
  %v360 = vadd.f32 0.0, %v359
  %v361 = vpop.f32.mrb[0].mxu0
  %362 = vmatprep.mubr.f32.mxu0 %v274
  %363 = vmatmul.mubr.f32.gmra.mrb[0].mxu0 %v273
  %v364 = vpop.f32.mrb[0].mxu0
  %v365 = vadd.f32 0.0, %v364
  %v366 = vpop.f32.mrb[0].mxu0
  %367 = vmatprep.mubr.f32.mxu0 %v276
  %368 = vmatmul.mubr.f32.gmra.mrb[0].mxu0 %v275
  %v369 = vpop.f32.mrb[0].mxu0
  %v370 = vadd.f32 0.0, %v369
  %v371 = vpop.f32.mrb[0].mxu0
  %372 = vmatprep.mubr.f32.mxu0 %v278
  %373 = vmatmul.mubr.f32.gmra.mrb[0].mxu0 %v277
  %v374 = vpop.f32.mrb[0].mxu0
  %v375 = vadd.f32 0.0, %v374
  %v376 = vpop.f32.mrb[0].mxu0
  %377 = vmatprep.mubr.f32.mxu0 %v280
  %378 = vmatmul.mubr.f32.gmra.mrb[0].mxu0 %v279
  %v379 = vpop.f32.mrb[0].mxu0
  %v380 = vadd.f32 0.0, %v379
  %v381 = vpop.f32.mrb[0].mxu0
  %382 = vmatprep.mubr.f32.mxu0 %v282
  %383 = vmatmul.mubr.f32.gmra.mrb[0].mxu0 %v281
  %v384 = vpop.f32.mrb[0].mxu0
  %v385 = vadd.f32 0.0, %v384
  %v386 = vpop.f32.mrb[0].mxu0
  %387 = vdwg.mxu0
  %v388 = vrsqrt.pop %v350
  %v389 = vrsqrt.pop %v355
  %v390 = vrsqrt.pop %v360
  %v391 = vrsqrt.pop %v365
  %v392 = vrsqrt.pop %v370
  %v393 = vrsqrt.pop %v375
  %v394 = vrsqrt.pop %v380
  %v395 = vrsqrt.pop %v385
  %v396 = vmul.f32 %v388, %v189
  %v397 = vmul.f32 %v389, %v194
  %v398 = vmul.f32 %v390, %v199
  %v399 = vmul.f32 %v391, %v204
  %v400 = vmul.f32 %v392, %v209
  %v401 = vmul.f32 %v393, %v214
  %v402 = vmul.f32 %v394, %v219
  %v403 = vmul.f32 %v395, %v224
  %v404 = vmul.f32 %v396, %v24
  %v405 = vmul.f32 %v397, %v25
  %v406 = vmul.f32 %v398, %v26
  %v407 = vmul.f32 %v399, %v27
  %v408 = vmul.f32 %v400, %v28
  %v409 = vmul.f32 %v401, %v29
  %v410 = vmul.f32 %v402, %v30
  %v411 = vmul.f32 %v403, %v31
  %v412 = vmul.f32 %v396, %v32
  %v413 = vmul.f32 %v397, %v33
  %v414 = vmul.f32 %v398, %v34
  %v415 = vmul.f32 %v399, %v35
  %v416 = vmul.f32 %v400, %v36
  %v417 = vmul.f32 %v401, %v37
  %v418 = vmul.f32 %v402, %v38
  %v419 = vmul.f32 %v403, %v39
  %v420 = vmul.f32 %v396, %v40
  %v421 = vmul.f32 %v397, %v41
  %v422 = vmul.f32 %v398, %v42
  %v423 = vmul.f32 %v399, %v43
  %v424 = vmul.f32 %v400, %v44
  %v425 = vmul.f32 %v401, %v45
  %v426 = vmul.f32 %v402, %v46
  %v427 = vmul.f32 %v403, %v47
  %v428 = vmul.f32 %v396, %v48
  %v429 = vmul.f32 %v397, %v49
  %v430 = vmul.f32 %v398, %v50
  %v431 = vmul.f32 %v399, %v51
  %v432 = vmul.f32 %v400, %v52
  %v433 = vmul.f32 %v401, %v53
  %v434 = vmul.f32 %v402, %v54
  %v435 = vmul.f32 %v403, %v55
  %436 = vmatprep.subr.mxu0 0.0
  %437 = vmatpush1.msra.mxu0 %v404
  %438 = vmatprep.subr.mxu0 0.0
  %439 = vmatpush1.msra.mxu0 %v405
  %440 = vmatprep.subr.mxu0 0.0
  %441 = vmatpush1.msra.mxu0 %v406
  %442 = vmatprep.subr.mxu0 0.0
  %443 = vmatpush1.msra.mxu0 %v407
  %444 = vmatprep.subr.mxu0 0.0
  %445 = vmatpush1.msra.mxu0 %v408
  %446 = vmatprep.subr.mxu0 0.0
  %447 = vmatpush1.msra.mxu0 %v409
  %448 = vmatprep.subr.mxu0 0.0
  %449 = vmatpush1.msra.mxu0 %v410
  %450 = vmatprep.subr.mxu0 0.0
  %451 = vmatpush1.msra.mxu0 %v411
  %452 = vmatprep.subr.mxu0 0.0
  %453 = vmatpush1.msra.mxu0 %v412
  %454 = vmatprep.subr.mxu0 0.0
  %455 = vmatpush1.msra.mxu0 %v413
  %456 = vmatprep.subr.mxu0 0.0
  %457 = vmatpush1.msra.mxu0 %v414
  %458 = vmatprep.subr.mxu0 0.0
  %459 = vmatpush1.msra.mxu0 %v415
  %460 = vmatprep.subr.mxu0 0.0
  %461 = vmatpush1.msra.mxu0 %v416
  %462 = vmatprep.subr.mxu0 0.0
  %463 = vmatpush1.msra.mxu0 %v417
  %464 = vmatprep.subr.mxu0 0.0
  %465 = vmatpush1.msra.mxu0 %v418
  %466 = vmatprep.subr.mxu0 0.0
  %467 = vmatpush1.msra.mxu0 %v419
  %468 = vmatprep.subr.mxu0 0.0
  %469 = vmatpush1.msra.mxu0 %v420
  %470 = vmatprep.subr.mxu0 0.0
  %471 = vmatpush1.msra.mxu0 %v421
  %472 = vmatprep.subr.mxu0 0.0
  %473 = vmatpush1.msra.mxu0 %v422
  %474 = vmatprep.subr.mxu0 0.0
  %475 = vmatpush1.msra.mxu0 %v423
  %476 = vmatprep.subr.mxu0 0.0
  %477 = vmatpush1.msra.mxu0 %v424
  %478 = vmatprep.subr.mxu0 0.0
  %479 = vmatpush1.msra.mxu0 %v425
  %480 = vmatprep.subr.mxu0 0.0
  %481 = vmatpush1.msra.mxu0 %v426
  %482 = vmatprep.subr.mxu0 0.0
  %483 = vmatpush1.msra.mxu0 %v427
  %484 = vmatprep.subr.mxu0 0.0
  %485 = vmatpush1.msra.mxu0 %v428
  %486 = vmatprep.subr.mxu0 0.0
  %487 = vmatpush1.msra.mxu0 %v429
  %488 = vmatprep.subr.mxu0 0.0
  %489 = vmatpush1.msra.mxu0 %v430
  %490 = vmatprep.subr.mxu0 0.0
  %491 = vmatpush1.msra.mxu0 %v431
  %492 = vmatprep.subr.mxu0 0.0
  %493 = vmatpush1.msra.mxu0 %v432
  %494 = vmatprep.subr.mxu0 0.0
  %495 = vmatpush1.msra.mxu0 %v433
  %496 = vmatprep.subr.mxu0 0.0
  %497 = vmatpush1.msra.mxu0 %v434
  %498 = vmatprep.subr.mxu0 0.0
  %499 = vmatpush1.msra.mxu0 %v435
  %500 = vmatprep.mubr.f32.mxu0 %v268
  %501 = vmatmul.mubr.f32.gmra.mrb[0].mxu0 %v267
  %v502 = vpop.f32.mrb[0].mxu0
  %v503 = vadd.f32 0.0, %v502
  %v504 = vpop.f32.mrb[0].mxu0
  %505 = vmatprep.mubr.f32.mxu0 %v270
  %506 = vmatmul.mubr.f32.gmra.mrb[0].mxu0 %v269
  %v507 = vpop.f32.mrb[0].mxu0
  %v508 = vadd.f32 0.0, %v507
  %v509 = vpop.f32.mrb[0].mxu0
  %510 = vmatprep.mubr.f32.mxu0 %v272
  %511 = vmatmul.mubr.f32.gmra.mrb[0].mxu0 %v271
  %v512 = vpop.f32.mrb[0].mxu0
  %v513 = vadd.f32 0.0, %v512
  %v514 = vpop.f32.mrb[0].mxu0
  %515 = vmatprep.mubr.f32.mxu0 %v274
  %516 = vmatmul.mubr.f32.gmra.mrb[0].mxu0 %v273
  %v517 = vpop.f32.mrb[0].mxu0
  %v518 = vadd.f32 0.0, %v517
  %v519 = vpop.f32.mrb[0].mxu0
  %520 = vmatprep.mubr.f32.mxu0 %v276
  %521 = vmatmul.mubr.f32.gmra.mrb[0].mxu0 %v275
  %v522 = vpop.f32.mrb[0].mxu0
  %v523 = vadd.f32 0.0, %v522
  %v524 = vpop.f32.mrb[0].mxu0
  %525 = vmatprep.mubr.f32.mxu0 %v278
  %526 = vmatmul.mubr.f32.gmra.mrb[0].mxu0 %v277
  %v527 = vpop.f32.mrb[0].mxu0
  %v528 = vadd.f32 0.0, %v527
  %v529 = vpop.f32.mrb[0].mxu0
  %530 = vmatprep.mubr.f32.mxu0 %v280
  %531 = vmatmul.mubr.f32.gmra.mrb[0].mxu0 %v279
  %v532 = vpop.f32.mrb[0].mxu0
  %v533 = vadd.f32 0.0, %v532
  %v534 = vpop.f32.mrb[0].mxu0
  %535 = vmatprep.mubr.f32.mxu0 %v282
  %536 = vmatmul.mubr.f32.gmra.mrb[0].mxu0 %v281
  %v537 = vpop.f32.mrb[0].mxu0
  %v538 = vadd.f32 0.0, %v537
  %v539 = vpop.f32.mrb[0].mxu0
  %540 = vdwg.mxu0
  %v541 = vmul.f32 %v388, %v503
  %v542 = vmul.f32 %v389, %v508
  %v543 = vmul.f32 %v390, %v513
  %v544 = vmul.f32 %v391, %v518
  %v545 = vmul.f32 %v392, %v523
  %v546 = vmul.f32 %v393, %v528
  %v547 = vmul.f32 %v394, %v533
  %v548 = vmul.f32 %v395, %v538
  %v550 = vlaneseq
  %v551 = vshrl.u32 %v550, 7
  %v552 = vsub.s32 0, %v551
  %v553 = vrot.slane %v56, %v552
  %v555 = vadd.f32 %v541, %v553
  %v556 = vadd.f32 %v542, %v553
  %v557 = vadd.f32 %v543, %v553
  %v558 = vadd.f32 %v544, %v553
  %v559 = vadd.f32 %v545, %v553
  %v560 = vadd.f32 %v546, %v553
  %v561 = vadd.f32 %v547, %v553
  %v562 = vadd.f32 %v548, %v553
  %563 = vst.msk [vmem:[%s5] sm:$0xff] %vm73, %v555
  %564 = vst.msk [vmem:[%s5 + $0x8] sm:$0xff] %vm73, %v556
  %565 = vst.msk [vmem:[%s5 + $0x10] sm:$0xff] %vm73, %v557
  %566 = vst.msk [vmem:[%s5 + $0x18] sm:$0xff] %vm73, %v558
  %567 = vst.msk [vmem:[%s5 + $0x20] sm:$0xff] %vm73, %v559
  %568 = vst.msk [vmem:[%s5 + $0x28] sm:$0xff] %vm73, %v560
  %569 = vst.msk [vmem:[%s5 + $0x30] sm:$0xff] %vm73, %v561
  %570 = vst.msk [vmem:[%s5 + $0x38] sm:$0xff] %vm73, %v562
  %s571 = scalar_lea.vmem %s1, 128
  %v572 = vld [vmem:[%s571] sm:$0xff]
  %v573 = vld [vmem:[%s571 + $0x8] sm:$0xff]
  %v574 = vld [vmem:[%s571 + $0x10] sm:$0xff]
  %v575 = vld [vmem:[%s571 + $0x18] sm:$0xff]
  %v576 = vld [vmem:[%s571 + $0x20] sm:$0xff]
  %v577 = vld [vmem:[%s571 + $0x28] sm:$0xff]
  %v578 = vld [vmem:[%s571 + $0x30] sm:$0xff]
  %v579 = vld [vmem:[%s571 + $0x38] sm:$0xff]
  %v580 = vld [vmem:[%s571 + $0x40] sm:$0xff]
  %v581 = vld [vmem:[%s571 + $0x48] sm:$0xff]
  %v582 = vld [vmem:[%s571 + $0x50] sm:$0xff]
  %v583 = vld [vmem:[%s571 + $0x58] sm:$0xff]
  %v584 = vld [vmem:[%s571 + $0x60] sm:$0xff]
  %v585 = vld [vmem:[%s571 + $0x68] sm:$0xff]
  %v586 = vld [vmem:[%s571 + $0x70] sm:$0xff]
  %v587 = vld [vmem:[%s571 + $0x78] sm:$0xff]
  %588 = vmatprep.subr.mxu0 0.0
  %589 = vmatpush1.msra.mxu0 %v24
  %590 = vmatprep.subr.mxu0 0.0
  %591 = vmatpush1.msra.mxu0 %v25
  %592 = vmatprep.subr.mxu0 0.0
  %593 = vmatpush1.msra.mxu0 %v26
  %594 = vmatprep.subr.mxu0 0.0
  %595 = vmatpush1.msra.mxu0 %v27
  %596 = vmatprep.subr.mxu0 0.0
  %597 = vmatpush1.msra.mxu0 %v28
  %598 = vmatprep.subr.mxu0 0.0
  %599 = vmatpush1.msra.mxu0 %v29
  %600 = vmatprep.subr.mxu0 0.0
  %601 = vmatpush1.msra.mxu0 %v30
  %602 = vmatprep.subr.mxu0 0.0
  %603 = vmatpush1.msra.mxu0 %v31
  %604 = vmatprep.subr.mxu0 0.0
  %605 = vmatpush1.msra.mxu0 %v32
  %606 = vmatprep.subr.mxu0 0.0
  %607 = vmatpush1.msra.mxu0 %v33
  %608 = vmatprep.subr.mxu0 0.0
  %609 = vmatpush1.msra.mxu0 %v34
  %610 = vmatprep.subr.mxu0 0.0
  %611 = vmatpush1.msra.mxu0 %v35
  %612 = vmatprep.subr.mxu0 0.0
  %613 = vmatpush1.msra.mxu0 %v36
  %614 = vmatprep.subr.mxu0 0.0
  %615 = vmatpush1.msra.mxu0 %v37
  %616 = vmatprep.subr.mxu0 0.0
  %617 = vmatpush1.msra.mxu0 %v38
  %618 = vmatprep.subr.mxu0 0.0
  %619 = vmatpush1.msra.mxu0 %v39
  %620 = vmatprep.subr.mxu0 0.0
  %621 = vmatpush1.msra.mxu0 %v40
  %622 = vmatprep.subr.mxu0 0.0
  %623 = vmatpush1.msra.mxu0 %v41
  %624 = vmatprep.subr.mxu0 0.0
  %625 = vmatpush1.msra.mxu0 %v42
  %626 = vmatprep.subr.mxu0 0.0
  %627 = vmatpush1.msra.mxu0 %v43
  %628 = vmatprep.subr.mxu0 0.0
  %629 = vmatpush1.msra.mxu0 %v44
  %630 = vmatprep.subr.mxu0 0.0
  %631 = vmatpush1.msra.mxu0 %v45
  %632 = vmatprep.subr.mxu0 0.0
  %633 = vmatpush1.msra.mxu0 %v46
  %634 = vmatprep.subr.mxu0 0.0
  %635 = vmatpush1.msra.mxu0 %v47
  %636 = vmatprep.subr.mxu0 0.0
  %637 = vmatpush1.msra.mxu0 %v48
  %638 = vmatprep.subr.mxu0 0.0
  %639 = vmatpush1.msra.mxu0 %v49
  %640 = vmatprep.subr.mxu0 0.0
  %641 = vmatpush1.msra.mxu0 %v50
  %642 = vmatprep.subr.mxu0 0.0
  %643 = vmatpush1.msra.mxu0 %v51
  %644 = vmatprep.subr.mxu0 0.0
  %645 = vmatpush1.msra.mxu0 %v52
  %646 = vmatprep.subr.mxu0 0.0
  %647 = vmatpush1.msra.mxu0 %v53
  %648 = vmatprep.subr.mxu0 0.0
  %649 = vmatpush1.msra.mxu0 %v54
  %650 = vmatprep.subr.mxu0 0.0
  %651 = vmatpush1.msra.mxu0 %v55
  %652 = vmatprep.mubr.f32.mxu0 %v573
  %653 = vmatmul.mubr.f32.gmra.mrb[0].mxu0 %v572
  %v654 = vpop.f32.mrb[0].mxu0
  %v655 = vadd.f32 0.0, %v654
  %v656 = vpop.f32.mrb[0].mxu0
  %657 = vmatprep.mubr.f32.mxu0 %v575
  %658 = vmatmul.mubr.f32.gmra.mrb[0].mxu0 %v574
  %v659 = vpop.f32.mrb[0].mxu0
  %v660 = vadd.f32 0.0, %v659
  %v661 = vpop.f32.mrb[0].mxu0
  %662 = vmatprep.mubr.f32.mxu0 %v577
  %663 = vmatmul.mubr.f32.gmra.mrb[0].mxu0 %v576
  %v664 = vpop.f32.mrb[0].mxu0
  %v665 = vadd.f32 0.0, %v664
  %v666 = vpop.f32.mrb[0].mxu0
  %667 = vmatprep.mubr.f32.mxu0 %v579
  %668 = vmatmul.mubr.f32.gmra.mrb[0].mxu0 %v578
  %v669 = vpop.f32.mrb[0].mxu0
  %v670 = vadd.f32 0.0, %v669
  %v671 = vpop.f32.mrb[0].mxu0
  %672 = vmatprep.mubr.f32.mxu0 %v581
  %673 = vmatmul.mubr.f32.gmra.mrb[0].mxu0 %v580
  %v674 = vpop.f32.mrb[0].mxu0
  %v675 = vadd.f32 0.0, %v674
  %v676 = vpop.f32.mrb[0].mxu0
  %677 = vmatprep.mubr.f32.mxu0 %v583
  %678 = vmatmul.mubr.f32.gmra.mrb[0].mxu0 %v582
  %v679 = vpop.f32.mrb[0].mxu0
  %v680 = vadd.f32 0.0, %v679
  %v681 = vpop.f32.mrb[0].mxu0
  %682 = vmatprep.mubr.f32.mxu0 %v585
  %683 = vmatmul.mubr.f32.gmra.mrb[0].mxu0 %v584
  %v684 = vpop.f32.mrb[0].mxu0
  %v685 = vadd.f32 0.0, %v684
  %v686 = vpop.f32.mrb[0].mxu0
  %687 = vmatprep.mubr.f32.mxu0 %v587
  %688 = vmatmul.mubr.f32.gmra.mrb[0].mxu0 %v586
  %v689 = vpop.f32.mrb[0].mxu0
  %v690 = vadd.f32 0.0, %v689
  %v691 = vpop.f32.mrb[0].mxu0
  %692 = vdwg.mxu0
  %v693 = vrsqrt.pop %v655
  %v694 = vrsqrt.pop %v660
  %v695 = vrsqrt.pop %v665
  %v696 = vrsqrt.pop %v670
  %v697 = vrsqrt.pop %v675
  %v698 = vrsqrt.pop %v680
  %v699 = vrsqrt.pop %v685
  %v700 = vrsqrt.pop %v690
  %v701 = vmul.f32 %v693, %v229
  %v702 = vmul.f32 %v694, %v234
  %v703 = vmul.f32 %v695, %v239
  %v704 = vmul.f32 %v696, %v244
  %v705 = vmul.f32 %v697, %v249
  %v706 = vmul.f32 %v698, %v254
  %v707 = vmul.f32 %v699, %v259
  %v708 = vmul.f32 %v700, %v264
  %v709 = vmul.f32 %v701, %v24
  %v710 = vmul.f32 %v702, %v25
  %v711 = vmul.f32 %v703, %v26
  %v712 = vmul.f32 %v704, %v27
  %v713 = vmul.f32 %v705, %v28
  %v714 = vmul.f32 %v706, %v29
  %v715 = vmul.f32 %v707, %v30
  %v716 = vmul.f32 %v708, %v31
  %v717 = vmul.f32 %v701, %v32
  %v718 = vmul.f32 %v702, %v33
  %v719 = vmul.f32 %v703, %v34
  %v720 = vmul.f32 %v704, %v35
  %v721 = vmul.f32 %v705, %v36
  %v722 = vmul.f32 %v706, %v37
  %v723 = vmul.f32 %v707, %v38
  %v724 = vmul.f32 %v708, %v39
  %v725 = vmul.f32 %v701, %v40
  %v726 = vmul.f32 %v702, %v41
  %v727 = vmul.f32 %v703, %v42
  %v728 = vmul.f32 %v704, %v43
  %v729 = vmul.f32 %v705, %v44
  %v730 = vmul.f32 %v706, %v45
  %v731 = vmul.f32 %v707, %v46
  %v732 = vmul.f32 %v708, %v47
  %v733 = vmul.f32 %v701, %v48
  %v734 = vmul.f32 %v702, %v49
  %v735 = vmul.f32 %v703, %v50
  %v736 = vmul.f32 %v704, %v51
  %v737 = vmul.f32 %v705, %v52
  %v738 = vmul.f32 %v706, %v53
  %v739 = vmul.f32 %v707, %v54
  %v740 = vmul.f32 %v708, %v55
  %741 = vmatprep.subr.mxu0 0.0
  %742 = vmatpush1.msra.mxu0 %v709
  %743 = vmatprep.subr.mxu0 0.0
  %744 = vmatpush1.msra.mxu0 %v710
  %745 = vmatprep.subr.mxu0 0.0
  %746 = vmatpush1.msra.mxu0 %v711
  %747 = vmatprep.subr.mxu0 0.0
  %748 = vmatpush1.msra.mxu0 %v712
  %749 = vmatprep.subr.mxu0 0.0
  %750 = vmatpush1.msra.mxu0 %v713
  %751 = vmatprep.subr.mxu0 0.0
  %752 = vmatpush1.msra.mxu0 %v714
  %753 = vmatprep.subr.mxu0 0.0
  %754 = vmatpush1.msra.mxu0 %v715
  %755 = vmatprep.subr.mxu0 0.0
  %756 = vmatpush1.msra.mxu0 %v716
  %757 = vmatprep.subr.mxu0 0.0
  %758 = vmatpush1.msra.mxu0 %v717
  %759 = vmatprep.subr.mxu0 0.0
  %760 = vmatpush1.msra.mxu0 %v718
  %761 = vmatprep.subr.mxu0 0.0
  %762 = vmatpush1.msra.mxu0 %v719
  %763 = vmatprep.subr.mxu0 0.0
  %764 = vmatpush1.msra.mxu0 %v720
  %765 = vmatprep.subr.mxu0 0.0
  %766 = vmatpush1.msra.mxu0 %v721
  %767 = vmatprep.subr.mxu0 0.0
  %768 = vmatpush1.msra.mxu0 %v722
  %769 = vmatprep.subr.mxu0 0.0
  %770 = vmatpush1.msra.mxu0 %v723
  %771 = vmatprep.subr.mxu0 0.0
  %772 = vmatpush1.msra.mxu0 %v724
  %773 = vmatprep.subr.mxu0 0.0
  %774 = vmatpush1.msra.mxu0 %v725
  %775 = vmatprep.subr.mxu0 0.0
  %776 = vmatpush1.msra.mxu0 %v726
  %777 = vmatprep.subr.mxu0 0.0
  %778 = vmatpush1.msra.mxu0 %v727
  %779 = vmatprep.subr.mxu0 0.0
  %780 = vmatpush1.msra.mxu0 %v728
  %781 = vmatprep.subr.mxu0 0.0
  %782 = vmatpush1.msra.mxu0 %v729
  %783 = vmatprep.subr.mxu0 0.0
  %784 = vmatpush1.msra.mxu0 %v730
  %785 = vmatprep.subr.mxu0 0.0
  %786 = vmatpush1.msra.mxu0 %v731
  %787 = vmatprep.subr.mxu0 0.0
  %788 = vmatpush1.msra.mxu0 %v732
  %789 = vmatprep.subr.mxu0 0.0
  %790 = vmatpush1.msra.mxu0 %v733
  %791 = vmatprep.subr.mxu0 0.0
  %792 = vmatpush1.msra.mxu0 %v734
  %793 = vmatprep.subr.mxu0 0.0
  %794 = vmatpush1.msra.mxu0 %v735
  %795 = vmatprep.subr.mxu0 0.0
  %796 = vmatpush1.msra.mxu0 %v736
  %797 = vmatprep.subr.mxu0 0.0
  %798 = vmatpush1.msra.mxu0 %v737
  %799 = vmatprep.subr.mxu0 0.0
  %800 = vmatpush1.msra.mxu0 %v738
  %801 = vmatprep.subr.mxu0 0.0
  %802 = vmatpush1.msra.mxu0 %v739
  %803 = vmatprep.subr.mxu0 0.0
  %804 = vmatpush1.msra.mxu0 %v740
  %805 = vmatprep.mubr.f32.mxu0 %v573
  %806 = vmatmul.mubr.f32.gmra.mrb[0].mxu0 %v572
  %v807 = vpop.f32.mrb[0].mxu0
  %v808 = vadd.f32 0.0, %v807
  %v809 = vpop.f32.mrb[0].mxu0
  %810 = vmatprep.mubr.f32.mxu0 %v575
  %811 = vmatmul.mubr.f32.gmra.mrb[0].mxu0 %v574
  %v812 = vpop.f32.mrb[0].mxu0
  %v813 = vadd.f32 0.0, %v812
  %v814 = vpop.f32.mrb[0].mxu0
  %815 = vmatprep.mubr.f32.mxu0 %v577
  %816 = vmatmul.mubr.f32.gmra.mrb[0].mxu0 %v576
  %v817 = vpop.f32.mrb[0].mxu0
  %v818 = vadd.f32 0.0, %v817
  %v819 = vpop.f32.mrb[0].mxu0
  %820 = vmatprep.mubr.f32.mxu0 %v579
  %821 = vmatmul.mubr.f32.gmra.mrb[0].mxu0 %v578
  %v822 = vpop.f32.mrb[0].mxu0
  %v823 = vadd.f32 0.0, %v822
  %v824 = vpop.f32.mrb[0].mxu0
  %825 = vmatprep.mubr.f32.mxu0 %v581
  %826 = vmatmul.mubr.f32.gmra.mrb[0].mxu0 %v580
  %v827 = vpop.f32.mrb[0].mxu0
  %v828 = vadd.f32 0.0, %v827
  %v829 = vpop.f32.mrb[0].mxu0
  %830 = vmatprep.mubr.f32.mxu0 %v583
  %831 = vmatmul.mubr.f32.gmra.mrb[0].mxu0 %v582
  %v832 = vpop.f32.mrb[0].mxu0
  %v833 = vadd.f32 0.0, %v832
  %v834 = vpop.f32.mrb[0].mxu0
  %835 = vmatprep.mubr.f32.mxu0 %v585
  %836 = vmatmul.mubr.f32.gmra.mrb[0].mxu0 %v584
  %v837 = vpop.f32.mrb[0].mxu0
  %v838 = vadd.f32 0.0, %v837
  %v839 = vpop.f32.mrb[0].mxu0
  %840 = vmatprep.mubr.f32.mxu0 %v587
  %841 = vmatmul.mubr.f32.gmra.mrb[0].mxu0 %v586
  %v842 = vpop.f32.mrb[0].mxu0
  %v843 = vadd.f32 0.0, %v842
  %v844 = vpop.f32.mrb[0].mxu0
  %845 = vdwg.mxu0
  %v846 = vmul.f32 %v693, %v808
  %v847 = vmul.f32 %v694, %v813
  %v848 = vmul.f32 %v695, %v818
  %v849 = vmul.f32 %v696, %v823
  %v850 = vmul.f32 %v697, %v828
  %v851 = vmul.f32 %v698, %v833
  %v852 = vmul.f32 %v699, %v838
  %v853 = vmul.f32 %v700, %v843
  %v854 = vadd.f32 %v846, %v553
  %v855 = vadd.f32 %v847, %v553
  %v856 = vadd.f32 %v848, %v553
  %v857 = vadd.f32 %v849, %v553
  %v858 = vadd.f32 %v850, %v553
  %v859 = vadd.f32 %v851, %v553
  %v860 = vadd.f32 %v852, %v553
  %v861 = vadd.f32 %v853, %v553
  %s862 = scalar_lea.vmem %s5, 64
  %863 = vst.msk [vmem:[%s862] sm:$0xff] %vm73, %v854
  %864 = vst.msk [vmem:[%s862 + $0x8] sm:$0xff] %vm73, %v855
  %865 = vst.msk [vmem:[%s862 + $0x10] sm:$0xff] %vm73, %v856
  %866 = vst.msk [vmem:[%s862 + $0x18] sm:$0xff] %vm73, %v857
  %867 = vst.msk [vmem:[%s862 + $0x20] sm:$0xff] %vm73, %v858
  %868 = vst.msk [vmem:[%s862 + $0x28] sm:$0xff] %vm73, %v859
  %869 = vst.msk [vmem:[%s862 + $0x30] sm:$0xff] %vm73, %v860
  %870 = vst.msk [vmem:[%s862 + $0x38] sm:$0xff] %vm73, %v861
  // Predicated region
  $region22: #{graph_convolution.1} parent=0 // pred_check
    _
  $region23: #{graph_convolution.1} parent=0 // pred_check_branch
    %872 = sbr.rel (0) target = $region25
  $region24: #{graph_convolution.1} parent=0 // pred_region
    _
  $region25: #{graph_convolution.1} parent=0 // pred_fallthru
    _
  // Predicated region
  $region26: #{graph_convolution.1} parent=0 // pred_check
    _
  $region27: #{graph_convolution.1} parent=0 // pred_check_branch
    %874 = sbr.rel (0) target = $region29
  $region28: #{graph_convolution.1} parent=0 // pred_region
    _
  $region29: #{graph_convolution.1} parent=0 // pred_fallthru
    _

</llo_original>
